<compile_context>
chip_gen: v7x
topology: tpu7x:2x2x1
jax: 0.10.0
libtpu: 0.0.40
codegen_flags: <defaults>
</compile_context>

<pallas_src>
import math
from functools import partial

import jax
import jax.numpy as jnp
from jax.experimental import pallas as pl
from jax.experimental.pallas import tpu as pltpu


_GELU_C = math.sqrt(2.0 / math.pi)
_LANE = 128


def _round_up(n, m):
    return ((n + m - 1) // m) * m


def _gelu_tanh(x):
    # BERT / OpenAI-GPT gelu: 0.5*x*(1 + tanh(sqrt(2/pi)*(x + 0.044715*x^3)))
    # tanh lowers to the EUP slot -> effectively free next to the MXU work.
    return 0.5 * x * (1.0 + jnp.tanh(_GELU_C * (x + 0.044715 * x * x * x)))


def _fused_mlp_kernel(*refs, num_layers):
    # refs = (x_ref, w0, b0, w1, b1, ..., wL, bL, o_ref)
    x_ref = refs[0]
    o_ref = refs[-1]
    wb_refs = refs[1:-1]

    h = x_ref[...]
    for i in range(num_layers + 1):
        w_ref = wb_refs[2 * i]
        b_ref = wb_refs[2 * i + 1]
        # Feed the MXU in the weight dtype (bf16); accumulate in f32.
        lhs = h if h.dtype == w_ref.dtype else h.astype(w_ref.dtype)
        y = jnp.dot(lhs, w_ref[...], preferred_element_type=jnp.float32)
        y = y + b_ref[...]  # f32 bias, broadcast over the batch tile
        if i < num_layers:
            # TODO(synk): training-mode Dropout not implemented (eval-mode
            # identity); batch_norm / layer_norm branches not constructed
            # (both False in this config).
            y = _gelu_tanh(y)
        h = y
    o_ref[...] = h.astype(o_ref.dtype)


def init_mlp_params(key, input_size, hidden_size, output_size, num_layers,
                    weight_dtype=jnp.bfloat16):
    """nn.Linear-style init (uniform +/- 1/sqrt(fan_in)).

    Weights are stored pre-transposed as [In_pad, Out_pad] (lane-padded to
    multiples of 128, zero-filled) in `weight_dtype` so the MXU runs at full
    bf16 throughput; biases stay f32 as [1, Out_pad]. Zero padding keeps the
    padded feature columns identically zero through every layer (gelu(0)=0).
    """
    params = []
    for i in range(num_layers + 1):
        n_in = input_size if i == 0 else hidden_size
        n_out = hidden_size if i < num_layers else output_size
        key, kw, kb = jax.random.split(key, 3)
        bound = 1.0 / math.sqrt(n_in)
        w_oi = jax.random.uniform(kw, (n_out, n_in), jnp.float32, -bound, bound)
        b = jax.random.uniform(kb, (n_out,), jnp.float32, -bound, bound)
        in_p, out_p = _round_up(n_in, _LANE), _round_up(n_out, _LANE)
        w_io = jnp.zeros((in_p, out_p), jnp.float32).at[:n_in, :n_out].set(w_oi.T)
        b_p = jnp.zeros((1, out_p), jnp.float32).at[0, :n_out].set(b)
        params.append((w_io.astype(weight_dtype), b_p))
    return params


def _pick_tb(B, batch_block):
    """Batch tile: multiple of 8 sublanes; prefer >=2 grid blocks (v7x 2 TCs)."""
    if B <= 8:
        return B                      # block dim == full array dim is allowed
    if B <= batch_block:
        half = ((B // 2) // 8) * 8    # multiple of 8 near B/2 -> >=2 blocks
        return half if half >= 8 else 8
    return batch_block


def _build_fused_call(B, tb, in_pad, out_pad, params, num_layers,
                      single_buffer_weights, vmem_limit, cost):
    resident_kwargs = (
        dict(pipeline_mode=pl.Buffered(1)) if single_buffer_weights else {}
    )

    in_specs = [pl.BlockSpec((tb, in_pad), lambda i: (i, 0))]
    for w_io, _ in params:
        n_in, n_out = w_io.shape
        # Weights/biases are grid-resident (constant index_map); single buffer.
        in_specs.append(pl.BlockSpec((n_in, n_out), lambda i: (0, 0),
                                     **resident_kwargs))
        in_specs.append(pl.BlockSpec((1, n_out), lambda i: (0, 0),
                                     **resident_kwargs))

    return pl.pallas_call(
        partial(_fused_mlp_kernel, num_layers=num_layers),
        out_shape=jax.ShapeDtypeStruct((B, out_pad), jnp.float32),
        grid_spec=pltpu.PrefetchScalarGridSpec(
            num_scalar_prefetch=0,
            grid=(pl.cdiv(B, tb),),
            in_specs=in_specs,
            out_specs=pl.BlockSpec((tb, out_pad), lambda i: (i, 0)),
        ),
        compiler_params=pltpu.CompilerParams(
            dimension_semantics=("parallel",),
            vmem_limit_bytes=vmem_limit,
        ),
        cost_estimate=cost,
    )


def mlp_forward(x, params, num_layers, output_size, *, batch_block=256):
    """Single fused pallas_call over all layers; batch-only grid."""
    B, In = x.shape
    in_pad = params[0][0].shape[0]
    out_pad = params[-1][0].shape[1]
    w_dtype = params[0][0].dtype

    # Zero-pad input features to lane width once; feed the MXU in bf16.
    x_p = jnp.pad(x, ((0, 0), (0, in_pad - In))) if in_pad != In else x
    x_p = x_p.astype(w_dtype)

    tb = _pick_tb(B, batch_block)

    weight_bytes = sum(w.size * w.dtype.itemsize + b.size * b.dtype.itemsize
                       for w, b in params)
    # TODO(synk): if single-buffered weights exceed ~40 MiB (v7x: 64 MiB VMEM
    # per TC), switch to streaming weights (grid axis over layers) instead of
    # keeping every layer resident; trivially fits for this module's sizes.
    act_bytes = 2 * tb * in_pad * x_p.dtype.itemsize + 2 * tb * out_pad * 4

    flops = 2 * B * sum(w.shape[0] * w.shape[1] for w, _ in params)
    transcendentals = B * sum(w.shape[1] for w, _ in params[:-1])
    bytes_accessed = (x_p.size * x_p.dtype.itemsize + weight_bytes
                      + B * out_pad * 4)
    cost = pl.CostEstimate(flops=flops, transcendentals=transcendentals,
                           bytes_accessed=bytes_accessed)

    def _limit(n_weight_buffers):
        need = weight_bytes * n_weight_buffers + act_bytes
        return int(min(max(need + (8 << 20), 16 << 20), 64 << 20))

    args = [x_p] + [t for wb in params for t in wb]
    try:
        call = _build_fused_call(B, tb, in_pad, out_pad, params, num_layers,
                                 True, _limit(1), cost)
        out = call(*args)
    except Exception:
        # Fallback if this jax version rejects pipeline_mode=pl.Buffered(1) on
        # a top-level pallas_call: default double-buffered weights.
        call = _build_fused_call(B, tb, in_pad, out_pad, params, num_layers,
                                 False, _limit(2), cost)
        out = call(*args)

    return out[:, :output_size]


def mlp_reference(x, params, num_layers, output_size):
    """Pure-JAX f32 reference using the same (bf16-stored) parameters."""
    in_pad = params[0][0].shape[0]
    h = jnp.pad(x, ((0, 0), (0, in_pad - x.shape[1]))).astype(jnp.float32)
    for i, (w_io, b2) in enumerate(params):
        h = h @ w_io.astype(jnp.float32) + b2
        if i < num_layers:
            h = _gelu_tanh(h)
    return h[:, :output_size]


if __name__ == "__main__":
    input_size, hidden_size, output_size, num_layers = 32, 64, 16, 2
    batch = 8

    key = jax.random.PRNGKey(0)
    key, kx = jax.random.split(key)
    x = jax.random.normal(kx, (batch, input_size), jnp.float32)
    params = init_mlp_params(key, input_size, hidden_size, output_size,
                             num_layers)

    out = mlp_forward(x, params, num_layers, output_size)
    out = jax.block_until_ready(out)

    ref = mlp_reference(x, params, num_layers, output_size)
    assert out.shape == (batch, output_size)
    # bf16 MXU operands / bf16 inter-layer casts (f32 accumulation) -> loosened
    # tolerance vs the all-f32 reference.
    assert jnp.allclose(out, ref, atol=3e-2, rtol=3e-2), "mismatch vs reference"

    print("KERNEL_OK")
</pallas_src>

<mosaic_0001>
module attributes {stable_mosaic.version = 11 : i64} {
  func.func @_fused_mlp_kernel(%arg0: i32, %arg1: memref<8x128xbf16, #tpu.memory_space<vmem>>, %arg2: memref<128x128xbf16, #tpu.memory_space<vmem>>, %arg3: memref<1x128xf32, #tpu.memory_space<vmem>>, %arg4: memref<128x128xbf16, #tpu.memory_space<vmem>>, %arg5: memref<1x128xf32, #tpu.memory_space<vmem>>, %arg6: memref<128x128xbf16, #tpu.memory_space<vmem>>, %arg7: memref<1x128xf32, #tpu.memory_space<vmem>>, %arg8: memref<8x128xf32, #tpu.memory_space<vmem>>) attributes {dimension_semantics = [#tpu.dimension_semantics<parallel>], iteration_bounds = array<i64: 1>, scalar_prefetch = 0 : i64, scratch_operands = 0 : i64, tpu.core_type = #tpu.core_type<tc>, window_params = [{transform_indices = @transform_0, window_bounds = array<i64: 8, 128>}, {pipeline_mode = #tpu.pipeline_mode<synchronous>, transform_indices = @transform_1, window_bounds = array<i64: 128, 128>}, {pipeline_mode = #tpu.pipeline_mode<synchronous>, transform_indices = @transform_2, window_bounds = array<i64: 1, 128>}, {pipeline_mode = #tpu.pipeline_mode<synchronous>, transform_indices = @transform_3, window_bounds = array<i64: 128, 128>}, {pipeline_mode = #tpu.pipeline_mode<synchronous>, transform_indices = @transform_4, window_bounds = array<i64: 1, 128>}, {pipeline_mode = #tpu.pipeline_mode<synchronous>, transform_indices = @transform_5, window_bounds = array<i64: 128, 128>}, {pipeline_mode = #tpu.pipeline_mode<synchronous>, transform_indices = @transform_6, window_bounds = array<i64: 1, 128>}, {transform_indices = @transform_7, window_bounds = array<i64: 8, 128>}]} {
    %c0 = arith.constant 0 : index
    %c0_0 = arith.constant 0 : index
    %0 = vector.load %arg1[%c0, %c0_0] : memref<8x128xbf16, #tpu.memory_space<vmem>>, vector<8x128xbf16>
    %c0_1 = arith.constant 0 : index
    %c0_2 = arith.constant 0 : index
    %1 = vector.load %arg2[%c0_1, %c0_2] : memref<128x128xbf16, #tpu.memory_space<vmem>>, vector<128x128xbf16>
    %cst = arith.constant dense<0.000000e+00> : vector<8x128xf32>
    %2 = tpu.matmul %0, %1, %cst {dimension_numbers = #tpu.dot_dimension_numbers<[1], [0], [0], [1], [0, 0, 1, 1], [], []>} : vector<8x128xbf16>, vector<128x128xbf16>, vector<8x128xf32> -> vector<8x128xf32>
    %c0_3 = arith.constant 0 : index
    %c0_4 = arith.constant 0 : index
    %3 = vector.load %arg3[%c0_3, %c0_4] : memref<1x128xf32, #tpu.memory_space<vmem>>, vector<1x128xf32>
    %4 = vector.broadcast %3 : vector<1x128xf32> to vector<8x128xf32>
    %5 = arith.addf %2, %4 : vector<8x128xf32>
    %cst_5 = arith.constant 5.000000e-01 : f32
    %6 = vector.broadcast %cst_5 : f32 to vector<8x128xf32>
    %7 = arith.mulf %6, %5 : vector<8x128xf32>
    %cst_6 = arith.constant 4.471500e-02 : f32
    %8 = vector.broadcast %cst_6 : f32 to vector<8x128xf32>
    %9 = arith.mulf %8, %5 : vector<8x128xf32>
    %10 = arith.mulf %9, %5 : vector<8x128xf32>
    %11 = arith.mulf %10, %5 : vector<8x128xf32>
    %12 = arith.addf %5, %11 : vector<8x128xf32>
    %cst_7 = arith.constant 0.797884583 : f32
    %13 = vector.broadcast %cst_7 : f32 to vector<8x128xf32>
    %14 = arith.mulf %13, %12 : vector<8x128xf32>
    %15 = math.tanh %14 : vector<8x128xf32>
    %cst_8 = arith.constant 1.000000e+00 : f32
    %16 = vector.broadcast %cst_8 : f32 to vector<8x128xf32>
    %17 = arith.addf %16, %15 : vector<8x128xf32>
    %18 = arith.mulf %7, %17 : vector<8x128xf32>
    %19 = arith.truncf %18 : vector<8x128xf32> to vector<8x128xbf16>
    %c0_9 = arith.constant 0 : index
    %c0_10 = arith.constant 0 : index
    %20 = vector.load %arg4[%c0_9, %c0_10] : memref<128x128xbf16, #tpu.memory_space<vmem>>, vector<128x128xbf16>
    %cst_11 = arith.constant dense<0.000000e+00> : vector<8x128xf32>
    %21 = tpu.matmul %19, %20, %cst_11 {dimension_numbers = #tpu.dot_dimension_numbers<[1], [0], [0], [1], [0, 0, 1, 1], [], []>} : vector<8x128xbf16>, vector<128x128xbf16>, vector<8x128xf32> -> vector<8x128xf32>
    %c0_12 = arith.constant 0 : index
    %c0_13 = arith.constant 0 : index
    %22 = vector.load %arg5[%c0_12, %c0_13] : memref<1x128xf32, #tpu.memory_space<vmem>>, vector<1x128xf32>
    %23 = vector.broadcast %22 : vector<1x128xf32> to vector<8x128xf32>
    %24 = arith.addf %21, %23 : vector<8x128xf32>
    %cst_14 = arith.constant 5.000000e-01 : f32
    %25 = vector.broadcast %cst_14 : f32 to vector<8x128xf32>
    %26 = arith.mulf %25, %24 : vector<8x128xf32>
    %cst_15 = arith.constant 4.471500e-02 : f32
    %27 = vector.broadcast %cst_15 : f32 to vector<8x128xf32>
    %28 = arith.mulf %27, %24 : vector<8x128xf32>
    %29 = arith.mulf %28, %24 : vector<8x128xf32>
    %30 = arith.mulf %29, %24 : vector<8x128xf32>
    %31 = arith.addf %24, %30 : vector<8x128xf32>
    %cst_16 = arith.constant 0.797884583 : f32
    %32 = vector.broadcast %cst_16 : f32 to vector<8x128xf32>
    %33 = arith.mulf %32, %31 : vector<8x128xf32>
    %34 = math.tanh %33 : vector<8x128xf32>
    %cst_17 = arith.constant 1.000000e+00 : f32
    %35 = vector.broadcast %cst_17 : f32 to vector<8x128xf32>
    %36 = arith.addf %35, %34 : vector<8x128xf32>
    %37 = arith.mulf %26, %36 : vector<8x128xf32>
    %38 = arith.truncf %37 : vector<8x128xf32> to vector<8x128xbf16>
    %c0_18 = arith.constant 0 : index
    %c0_19 = arith.constant 0 : index
    %39 = vector.load %arg6[%c0_18, %c0_19] : memref<128x128xbf16, #tpu.memory_space<vmem>>, vector<128x128xbf16>
    %cst_20 = arith.constant dense<0.000000e+00> : vector<8x128xf32>
    %40 = tpu.matmul %38, %39, %cst_20 {dimension_numbers = #tpu.dot_dimension_numbers<[1], [0], [0], [1], [0, 0, 1, 1], [], []>} : vector<8x128xbf16>, vector<128x128xbf16>, vector<8x128xf32> -> vector<8x128xf32>
    %c0_21 = arith.constant 0 : index
    %c0_22 = arith.constant 0 : index
    %41 = vector.load %arg7[%c0_21, %c0_22] : memref<1x128xf32, #tpu.memory_space<vmem>>, vector<1x128xf32>
    %42 = vector.broadcast %41 : vector<1x128xf32> to vector<8x128xf32>
    %43 = arith.addf %40, %42 : vector<8x128xf32>
    %c0_23 = arith.constant 0 : index
    %c0_24 = arith.constant 0 : index
    %44 = vector.load %arg8[%c0_23, %c0_24] : memref<8x128xf32, #tpu.memory_space<vmem>>, vector<8x128xf32>
    tpu.vector_store %arg8[%c0_23, %c0_24], %43 {strides = array<i32>} : memref<8x128xf32, #tpu.memory_space<vmem>>, vector<8x128xf32>,
    return
  }
  func.func @transform_0(%arg0: i32) -> (i32, i32) {
    %c0_i32 = arith.constant 0 : i32
    %c0_i32_0 = arith.constant 0 : i32
    return %arg0, %c0_i32 : i32, i32
  }
  func.func @transform_1(%arg0: i32) -> (i32, i32) {
    %c0_i32 = arith.constant 0 : i32
    %c0_i32_0 = arith.constant 0 : i32
    %c0_i32_1 = arith.constant 0 : i32
    return %c0_i32, %c0_i32_0 : i32, i32
  }
  func.func @transform_2(%arg0: i32) -> (i32, i32) {
    %c0_i32 = arith.constant 0 : i32
    %c0_i32_0 = arith.constant 0 : i32
    %c0_i32_1 = arith.constant 0 : i32
    return %c0_i32, %c0_i32_0 : i32, i32
  }
  func.func @transform_3(%arg0: i32) -> (i32, i32) {
    %c0_i32 = arith.constant 0 : i32
    %c0_i32_0 = arith.constant 0 : i32
    %c0_i32_1 = arith.constant 0 : i32
    return %c0_i32, %c0_i32_0 : i32, i32
  }
  func.func @transform_4(%arg0: i32) -> (i32, i32) {
    %c0_i32 = arith.constant 0 : i32
    %c0_i32_0 = arith.constant 0 : i32
    %c0_i32_1 = arith.constant 0 : i32
    return %c0_i32, %c0_i32_0 : i32, i32
  }
  func.func @transform_5(%arg0: i32) -> (i32, i32) {
    %c0_i32 = arith.constant 0 : i32
    %c0_i32_0 = arith.constant 0 : i32
    %c0_i32_1 = arith.constant 0 : i32
    return %c0_i32, %c0_i32_0 : i32, i32
  }
  func.func @transform_6(%arg0: i32) -> (i32, i32) {
    %c0_i32 = arith.constant 0 : i32
    %c0_i32_0 = arith.constant 0 : i32
    %c0_i32_1 = arith.constant 0 : i32
    return %c0_i32, %c0_i32_0 : i32, i32
  }
  func.func @transform_7(%arg0: i32) -> (i32, i32) {
    %c0_i32 = arith.constant 0 : i32
    %c0_i32_0 = arith.constant 0 : i32
    return %arg0, %c0_i32 : i32, i32
  }
}

module attributes {stable_mosaic.version = 11 : i64} {
  func.func @_fused_mlp_kernel(%arg0: i32, %arg1: memref<8x128xbf16, #tpu.memory_space<vmem>>, %arg2: memref<128x128xbf16, #tpu.memory_space<vmem>>, %arg3: memref<1x128xf32, #tpu.memory_space<vmem>>, %arg4: memref<128x128xbf16, #tpu.memory_space<vmem>>, %arg5: memref<1x128xf32, #tpu.memory_space<vmem>>, %arg6: memref<128x128xbf16, #tpu.memory_space<vmem>>, %arg7: memref<1x128xf32, #tpu.memory_space<vmem>>, %arg8: memref<8x128xf32, #tpu.memory_space<vmem>>) attributes {dimension_semantics = [#tpu.dimension_semantics<parallel>], iteration_bounds = array<i64: 1>, scalar_prefetch = 0 : i64, scratch_operands = 0 : i64, tpu.core_type = #tpu.core_type<tc>, window_params = [{transform_indices = @transform_0, window_bounds = array<i64: 8, 128>}, {pipeline_mode = #tpu.pipeline_mode<synchronous>, transform_indices = @transform_1, window_bounds = array<i64: 128, 128>}, {pipeline_mode = #tpu.pipeline_mode<synchronous>, transform_indices = @transform_2, window_bounds = array<i64: 1, 128>}, {pipeline_mode = #tpu.pipeline_mode<synchronous>, transform_indices = @transform_3, window_bounds = array<i64: 128, 128>}, {pipeline_mode = #tpu.pipeline_mode<synchronous>, transform_indices = @transform_4, window_bounds = array<i64: 1, 128>}, {pipeline_mode = #tpu.pipeline_mode<synchronous>, transform_indices = @transform_5, window_bounds = array<i64: 128, 128>}, {pipeline_mode = #tpu.pipeline_mode<synchronous>, transform_indices = @transform_6, window_bounds = array<i64: 1, 128>}, {transform_indices = @transform_7, window_bounds = array<i64: 8, 128>}]} {
    %c0 = arith.constant 0 : index
    %c0_0 = arith.constant 0 : index
    %0 = vector.load %arg1[%c0, %c0_0] : memref<8x128xbf16, #tpu.memory_space<vmem>>, vector<8x128xbf16>
    %c0_1 = arith.constant 0 : index
    %c0_2 = arith.constant 0 : index
    %1 = vector.load %arg2[%c0_1, %c0_2] : memref<128x128xbf16, #tpu.memory_space<vmem>>, vector<128x128xbf16>
    %cst = arith.constant dense<0.000000e+00> : vector<8x128xf32>
    %2 = tpu.matmul %0, %1, %cst {dimension_numbers = #tpu.dot_dimension_numbers<[1], [0], [0], [1], [0, 0, 1, 1], [], []>} : vector<8x128xbf16>, vector<128x128xbf16>, vector<8x128xf32> -> vector<8x128xf32>
    %c0_3 = arith.constant 0 : index
    %c0_4 = arith.constant 0 : index
    %3 = vector.load %arg3[%c0_3, %c0_4] : memref<1x128xf32, #tpu.memory_space<vmem>>, vector<1x128xf32>
    %4 = vector.broadcast %3 : vector<1x128xf32> to vector<8x128xf32>
    %5 = arith.addf %2, %4 : vector<8x128xf32>
    %cst_5 = arith.constant 5.000000e-01 : f32
    %6 = vector.broadcast %cst_5 : f32 to vector<8x128xf32>
    %7 = arith.mulf %6, %5 : vector<8x128xf32>
    %cst_6 = arith.constant 4.471500e-02 : f32
    %8 = vector.broadcast %cst_6 : f32 to vector<8x128xf32>
    %9 = arith.mulf %8, %5 : vector<8x128xf32>
    %10 = arith.mulf %9, %5 : vector<8x128xf32>
    %11 = arith.mulf %10, %5 : vector<8x128xf32>
    %12 = arith.addf %5, %11 : vector<8x128xf32>
    %cst_7 = arith.constant 0.797884583 : f32
    %13 = vector.broadcast %cst_7 : f32 to vector<8x128xf32>
    %14 = arith.mulf %13, %12 : vector<8x128xf32>
    %15 = math.tanh %14 : vector<8x128xf32>
    %cst_8 = arith.constant 1.000000e+00 : f32
    %16 = vector.broadcast %cst_8 : f32 to vector<8x128xf32>
    %17 = arith.addf %16, %15 : vector<8x128xf32>
    %18 = arith.mulf %7, %17 : vector<8x128xf32>
    %19 = arith.truncf %18 : vector<8x128xf32> to vector<8x128xbf16>
    %c0_9 = arith.constant 0 : index
    %c0_10 = arith.constant 0 : index
    %20 = vector.load %arg4[%c0_9, %c0_10] : memref<128x128xbf16, #tpu.memory_space<vmem>>, vector<128x128xbf16>
    %cst_11 = arith.constant dense<0.000000e+00> : vector<8x128xf32>
    %21 = tpu.matmul %19, %20, %cst_11 {dimension_numbers = #tpu.dot_dimension_numbers<[1], [0], [0], [1], [0, 0, 1, 1], [], []>} : vector<8x128xbf16>, vector<128x128xbf16>, vector<8x128xf32> -> vector<8x128xf32>
    %c0_12 = arith.constant 0 : index
    %c0_13 = arith.constant 0 : index
    %22 = vector.load %arg5[%c0_12, %c0_13] : memref<1x128xf32, #tpu.memory_space<vmem>>, vector<1x128xf32>
    %23 = vector.broadcast %22 : vector<1x128xf32> to vector<8x128xf32>
    %24 = arith.addf %21, %23 : vector<8x128xf32>
    %cst_14 = arith.constant 5.000000e-01 : f32
    %25 = vector.broadcast %cst_14 : f32 to vector<8x128xf32>
    %26 = arith.mulf %25, %24 : vector<8x128xf32>
    %cst_15 = arith.constant 4.471500e-02 : f32
    %27 = vector.broadcast %cst_15 : f32 to vector<8x128xf32>
    %28 = arith.mulf %27, %24 : vector<8x128xf32>
    %29 = arith.mulf %28, %24 : vector<8x128xf32>
    %30 = arith.mulf %29, %24 : vector<8x128xf32>
    %31 = arith.addf %24, %30 : vector<8x128xf32>
    %cst_16 = arith.constant 0.797884583 : f32
    %32 = vector.broadcast %cst_16 : f32 to vector<8x128xf32>
    %33 = arith.mulf %32, %31 : vector<8x128xf32>
    %34 = math.tanh %33 : vector<8x128xf32>
    %cst_17 = arith.constant 1.000000e+00 : f32
    %35 = vector.broadcast %cst_17 : f32 to vector<8x128xf32>
    %36 = arith.addf %35, %34 : vector<8x128xf32>
    %37 = arith.mulf %26, %36 : vector<8x128xf32>
    %38 = arith.truncf %37 : vector<8x128xf32> to vector<8x128xbf16>
    %c0_18 = arith.constant 0 : index
    %c0_19 = arith.constant 0 : index
    %39 = vector.load %arg6[%c0_18, %c0_19] : memref<128x128xbf16, #tpu.memory_space<vmem>>, vector<128x128xbf16>
    %cst_20 = arith.constant dense<0.000000e+00> : vector<8x128xf32>
    %40 = tpu.matmul %38, %39, %cst_20 {dimension_numbers = #tpu.dot_dimension_numbers<[1], [0], [0], [1], [0, 0, 1, 1], [], []>} : vector<8x128xbf16>, vector<128x128xbf16>, vector<8x128xf32> -> vector<8x128xf32>
    %c0_21 = arith.constant 0 : index
    %c0_22 = arith.constant 0 : index
    %41 = vector.load %arg7[%c0_21, %c0_22] : memref<1x128xf32, #tpu.memory_space<vmem>>, vector<1x128xf32>
    %42 = vector.broadcast %41 : vector<1x128xf32> to vector<8x128xf32>
    %43 = arith.addf %40, %42 : vector<8x128xf32>
    %c0_23 = arith.constant 0 : index
    %c0_24 = arith.constant 0 : index
    %44 = vector.load %arg8[%c0_23, %c0_24] : memref<8x128xf32, #tpu.memory_space<vmem>>, vector<8x128xf32>
    tpu.vector_store %arg8[%c0_23, %c0_24], %43 {strides = array<i32>} : memref<8x128xf32, #tpu.memory_space<vmem>>, vector<8x128xf32>,
    return
  }
  func.func @transform_0(%arg0: i32) -> (i32, i32) {
    %c0_i32 = arith.constant 0 : i32
    %c0_i32_0 = arith.constant 0 : i32
    return %arg0, %c0_i32 : i32, i32
  }
  func.func @transform_1(%arg0: i32) -> (i32, i32) {
    %c0_i32 = arith.constant 0 : i32
    %c0_i32_0 = arith.constant 0 : i32
    %c0_i32_1 = arith.constant 0 : i32
    return %c0_i32, %c0_i32_0 : i32, i32
  }
  func.func @transform_2(%arg0: i32) -> (i32, i32) {
    %c0_i32 = arith.constant 0 : i32
    %c0_i32_0 = arith.constant 0 : i32
    %c0_i32_1 = arith.constant 0 : i32
    return %c0_i32, %c0_i32_0 : i32, i32
  }
  func.func @transform_3(%arg0: i32) -> (i32, i32) {
    %c0_i32 = arith.constant 0 : i32
    %c0_i32_0 = arith.constant 0 : i32
    %c0_i32_1 = arith.constant 0 : i32
    return %c0_i32, %c0_i32_0 : i32, i32
  }
  func.func @transform_4(%arg0: i32) -> (i32, i32) {
    %c0_i32 = arith.constant 0 : i32
    %c0_i32_0 = arith.constant 0 : i32
    %c0_i32_1 = arith.constant 0 : i32
    return %c0_i32, %c0_i32_0 : i32, i32
  }
  func.func @transform_5(%arg0: i32) -> (i32, i32) {
    %c0_i32 = arith.constant 0 : i32
    %c0_i32_0 = arith.constant 0 : i32
    %c0_i32_1 = arith.constant 0 : i32
    return %c0_i32, %c0_i32_0 : i32, i32
  }
  func.func @transform_6(%arg0: i32) -> (i32, i32) {
    %c0_i32 = arith.constant 0 : i32
    %c0_i32_0 = arith.constant 0 : i32
    %c0_i32_1 = arith.constant 0 : i32
    return %c0_i32, %c0_i32_0 : i32, i32
  }
  func.func @transform_7(%arg0: i32) -> (i32, i32) {
    %c0_i32 = arith.constant 0 : i32
    %c0_i32_0 = arith.constant 0 : i32
    return %arg0, %c0_i32 : i32, i32
  }
}

</mosaic_0001>

<llo_original>
// kernel: tpu_custom_call.1
$region0: #{tpu_custom_call.1}
  #allocation0 [shape = 'u32[]', space=smem, size = 0x4, offset = 0x4, fixed_abs, tag = 'smem constant byte address 0x4 - core index']
  #allocation1 [shape = 'u32[144,128]{1,0:T(1,128)}', space=vmem, size = 0x12000, scoped, tag = 'internal scratch']
  %s0 = inlined_call_operand.hbm [shape: bf16[8,128], index: 0, kind: input, shape index: {}]
  %s1 = inlined_call_operand.hbm [shape: bf16[128,128], index: 1, kind: input, shape index: {}]
  %s2 = inlined_call_operand.vmem [shape: f32[1,128], index: 2, kind: input, shape index: {}]
  %s3 = inlined_call_operand.hbm [shape: bf16[128,128], index: 3, kind: input, shape index: {}]
  %s4 = inlined_call_operand.vmem [shape: f32[1,128], index: 4, kind: input, shape index: {}]
  %s5 = inlined_call_operand.hbm [shape: bf16[128,128], index: 5, kind: input, shape index: {}]
  %s6 = inlined_call_operand.vmem [shape: f32[1,128], index: 6, kind: input, shape index: {}]
  %s7 = inlined_call_operand.hbm [shape: f32[8,128], index: 7, kind: output, shape index: {}]
  %s8 = sld [smem:[#allocation0]]
  $region54: #{tpu_custom_call.1} parent=0
    _
  %s10 = ssub.s32 1, %s8
  %s11 = scalar_select 0, %s10, %s8
  $region1: #{tpu_custom_call.1} parent=0
    #allocation2 [shape = 'u8[2048]{0}', space=vmem, size = 0x800, scoped, tag = 'input window, operand 0, single buffered']
    #allocation3 [shape = 's32[1]{0}', space=sflag, size = 0x4, scoped, tag = 'scoped memory for tpu_custom_call.1']
    #allocation4 [shape = 's32[1]{0}', space=sflag, size = 0x4, scoped, tag = 'scoped memory for tpu_custom_call.1']
    #allocation5 [shape = 'u8[32768]{0}', space=vmem, size = 0x8000, scoped, tag = 'input window, operand 1, single buffered']
    #allocation6 [shape = 's32[1]{0}', space=sflag, size = 0x4, scoped, tag = 'scoped memory for tpu_custom_call.1']
    #allocation7 [shape = 'u8[32768]{0}', space=vmem, size = 0x8000, scoped, tag = 'input window, operand 3, single buffered']
    #allocation8 [shape = 'u8[32768]{0}', space=vmem, size = 0x8000, scoped, tag = 'input window, operand 5, single buffered']
    #allocation9 [shape = 's32[1]{0}', space=sflag, size = 0x4, scoped, tag = 'scoped memory for tpu_custom_call.1']
    #allocation10 [shape = 'u8[4096]{0}', space=vmem, size = 0x1000, scoped, tag = 'output window, operand 0, single buffered']
    %12 = vsyncpa [#allocation3], 0
    %13 = vsyncpa [#allocation6], 0
    %14 = vsyncpa [#allocation9], 0
    %15 = vsyncpa [#allocation4], 0
    // Predicated region
    $region2: #{tpu_custom_call.1} parent=1 // pred_check
      _
    $region3: #{tpu_custom_call.1} parent=1 // pred_check_branch
      %17 = sbr.rel (0) target = $region5
    $region4: #{tpu_custom_call.1} parent=1 // pred_region
      %s19 = ssub.s32 64, 64
      %20 = vsyncadd [#allocation3], %s19
      %s22 = sshll.u32 [#allocation2], 4
      %s23 = int_to_ptr.vmem [resolvable:$true] %s22
      %25 = dma.hbm_to_vmem [thread:$0]  %s0, 64, %s23, [#allocation3]
    $region5: #{tpu_custom_call.1} parent=1 // pred_fallthru
      _
    // Predicated region
    $region6: #{tpu_custom_call.1} parent=1 // pred_check
      _
    $region7: #{tpu_custom_call.1} parent=1 // pred_check_branch
      %27 = sbr.rel (0) target = $region9
    $region8: #{tpu_custom_call.1} parent=1 // pred_region
      %s29 = ssub.s32 1024, 1024
      %30 = vsyncadd [#allocation6], %s29
      %s31 = sshll.u32 [#allocation5], 4
      %s32 = int_to_ptr.vmem [resolvable:$true] %s31
      %37 = dma.hbm_to_vmem [thread:$0]  %s1, 1024, %s32, [#allocation6], 64, 64, 4
    $region9: #{tpu_custom_call.1} parent=1 // pred_fallthru
      _
    // Predicated region
    $region10: #{tpu_custom_call.1} parent=1 // pred_check
      _
    $region11: #{tpu_custom_call.1} parent=1 // pred_check_branch
      %39 = sbr.rel (0) target = $region13
    $region12: #{tpu_custom_call.1} parent=1 // pred_region
      _
    $region13: #{tpu_custom_call.1} parent=1 // pred_fallthru
      _
    // Predicated region
    $region14: #{tpu_custom_call.1} parent=1 // pred_check
      _
    $region15: #{tpu_custom_call.1} parent=1 // pred_check_branch
      %41 = sbr.rel (0) target = $region17
    $region16: #{tpu_custom_call.1} parent=1 // pred_region
      %s43 = ssub.s32 1024, 1024
      %44 = vsyncadd [#allocation6], %s43
      %s45 = sshll.u32 [#allocation7], 4
      %s46 = int_to_ptr.vmem [resolvable:$true] %s45
      %51 = dma.hbm_to_vmem [thread:$0]  %s3, 1024, %s46, [#allocation6], 64, 64, 4
    $region17: #{tpu_custom_call.1} parent=1 // pred_fallthru
      _
    // Predicated region
    $region18: #{tpu_custom_call.1} parent=1 // pred_check
      _
    $region19: #{tpu_custom_call.1} parent=1 // pred_check_branch
      %53 = sbr.rel (0) target = $region21
    $region20: #{tpu_custom_call.1} parent=1 // pred_region
      _
    $region21: #{tpu_custom_call.1} parent=1 // pred_fallthru
      _
    // Predicated region
    $region22: #{tpu_custom_call.1} parent=1 // pred_check
      _
    $region23: #{tpu_custom_call.1} parent=1 // pred_check_branch
      %55 = sbr.rel (0) target = $region25
    $region24: #{tpu_custom_call.1} parent=1 // pred_region
      %s57 = ssub.s32 1024, 1024
      %58 = vsyncadd [#allocation9], %s57
      %s59 = sshll.u32 [#allocation8], 4
      %s60 = int_to_ptr.vmem [resolvable:$true] %s59
      %65 = dma.hbm_to_vmem [thread:$0]  %s5, 1024, %s60, [#allocation9], 64, 64, 4
    $region25: #{tpu_custom_call.1} parent=1 // pred_fallthru
      _
    // Predicated region
    $region26: #{tpu_custom_call.1} parent=1 // pred_check
      _
    $region27: #{tpu_custom_call.1} parent=1 // pred_check_branch
      %67 = sbr.rel (0) target = $region29
    $region28: #{tpu_custom_call.1} parent=1 // pred_region
      _
    $region29: #{tpu_custom_call.1} parent=1 // pred_fallthru
      _
    // Predicated region
    $region30: #{tpu_custom_call.1} parent=1 // pred_check
      _
    $region31: #{tpu_custom_call.1} parent=1 // pred_check_branch
      %69 = sbr.rel (0) target = $region33
    $region32: #{tpu_custom_call.1} parent=1 // pred_region
      %70 = dma.done [#allocation3], 64
    $region33: #{tpu_custom_call.1} parent=1 // pred_fallthru
      _
    // Predicated region
    $region34: #{tpu_custom_call.1} parent=1 // pred_check
      _
    $region35: #{tpu_custom_call.1} parent=1 // pred_check_branch
      %72 = sbr.rel (0) target = $region37
    $region36: #{tpu_custom_call.1} parent=1 // pred_region
      %73 = dma.done [#allocation6], 1024
    $region37: #{tpu_custom_call.1} parent=1 // pred_fallthru
      _
    // Predicated region
    $region38: #{tpu_custom_call.1} parent=1 // pred_check
      _
    $region39: #{tpu_custom_call.1} parent=1 // pred_check_branch
      %75 = sbr.rel (0) target = $region41
    $region40: #{tpu_custom_call.1} parent=1 // pred_region
      %76 = dma.done [#allocation6], 1024
    $region41: #{tpu_custom_call.1} parent=1 // pred_fallthru
      _
    // Predicated region
    $region42: #{tpu_custom_call.1} parent=1 // pred_check
      _
    $region43: #{tpu_custom_call.1} parent=1 // pred_check_branch
      %78 = sbr.rel (0) target = $region45
    $region44: #{tpu_custom_call.1} parent=1 // pred_region
      %79 = dma.done [#allocation9], 1024
    $region45: #{tpu_custom_call.1} parent=1 // pred_fallthru
      _
    %v81 = vld [vmem:[#allocation2] sm:$0xf]
    %v82 = vld [vmem:[#allocation5] sm:$0xf]
    %v83 = vld [vmem:[#allocation5 + $0x4] sm:$0xf]
    %v84 = vld [vmem:[#allocation5 + $0x8] sm:$0xf]
    %v85 = vld [vmem:[#allocation5 + $0xc] sm:$0xf]
    %v86 = vld [vmem:[#allocation5 + $0x10] sm:$0xf]
    %v87 = vld [vmem:[#allocation5 + $0x14] sm:$0xf]
    %v88 = vld [vmem:[#allocation5 + $0x18] sm:$0xf]
    %v89 = vld [vmem:[#allocation5 + $0x1c] sm:$0xf]
    %v90 = vld [vmem:[#allocation5 + $0x20] sm:$0xf]
    %v91 = vld [vmem:[#allocation5 + $0x24] sm:$0xf]
    %v92 = vld [vmem:[#allocation5 + $0x28] sm:$0xf]
    %v93 = vld [vmem:[#allocation5 + $0x2c] sm:$0xf]
    %v94 = vld [vmem:[#allocation5 + $0x30] sm:$0xf]
    %v95 = vld [vmem:[#allocation5 + $0x34] sm:$0xf]
    %v96 = vld [vmem:[#allocation5 + $0x38] sm:$0xf]
    %v97 = vld [vmem:[#allocation5 + $0x3c] sm:$0xf]
    %v98 = vld [vmem:[%s2] sm:$0x1]
    %v100 = vlaneseq
    %v101 = vshrl.u32 %v100, 7
    %v102 = vsub.s32 0, %v101
    %v103 = vrot.slane %v98, %v102
    %v121 = vunpack.c.l.b16 %v82
    %v122 = vunpack.c.l.b16 %v83
    %v123 = vunpack.c.l.b16 %v84
    %v124 = vunpack.c.l.b16 %v85
    %v125 = vunpack.c.l.b16 %v86
    %v126 = vunpack.c.l.b16 %v87
    %v127 = vunpack.c.l.b16 %v88
    %v128 = vunpack.c.l.b16 %v89
    %v129 = vunpack.c.l.b16 %v90
    %v130 = vunpack.c.l.b16 %v91
    %v131 = vunpack.c.l.b16 %v92
    %v132 = vunpack.c.l.b16 %v93
    %v133 = vunpack.c.l.b16 %v94
    %v134 = vunpack.c.l.b16 %v95
    %v135 = vunpack.c.l.b16 %v96
    %v136 = vunpack.c.l.b16 %v97
    %v137 = vpack.c.b16 %v122, %v121
    %v138 = vpack.c.b16 %v124, %v123
    %v139 = vpack.c.b16 %v126, %v125
    %v140 = vpack.c.b16 %v128, %v127
    %v141 = vpack.c.b16 %v130, %v129
    %v142 = vpack.c.b16 %v132, %v131
    %v143 = vpack.c.b16 %v134, %v133
    %v144 = vpack.c.b16 %v136, %v135
    %153 = vmatprep.subr.bf16.mxu0 0
    %154 = vmatpush1.bf16.msra.mxu0 %v137
    %155 = vmatprep.subr.bf16.mxu0 0
    %156 = vmatpush1.bf16.msra.mxu0 %v138
    %157 = vmatprep.subr.bf16.mxu0 0
    %158 = vmatpush1.bf16.msra.mxu0 %v139
    %159 = vmatprep.subr.bf16.mxu0 0
    %160 = vmatpush1.bf16.msra.mxu0 %v140
    %161 = vmatprep.subr.bf16.mxu0 0
    %162 = vmatpush1.bf16.msra.mxu0 %v141
    %163 = vmatprep.subr.bf16.mxu0 0
    %164 = vmatpush1.bf16.msra.mxu0 %v142
    %165 = vmatprep.subr.bf16.mxu0 0
    %166 = vmatpush1.bf16.msra.mxu0 %v143
    %167 = vmatprep.subr.bf16.mxu0 0
    %168 = vmatpush1.bf16.msra.mxu0 %v144
    %169 = vmatprep.subr.bf16.mxu0 0
    %170 = vmatpush1.bf16.msra.mxu0 0
    %171 = vmatprep.subr.bf16.mxu0 0
    %172 = vmatpush1.bf16.msra.mxu0 0
    %173 = vmatprep.subr.bf16.mxu0 0
    %174 = vmatpush1.bf16.msra.mxu0 0
    %175 = vmatprep.subr.bf16.mxu0 0
    %176 = vmatpush1.bf16.msra.mxu0 0
    %177 = vmatprep.subr.bf16.mxu0 0
    %178 = vmatpush1.bf16.msra.mxu0 0
    %179 = vmatprep.subr.bf16.mxu0 0
    %180 = vmatpush1.bf16.msra.mxu0 0
    %181 = vmatprep.subr.bf16.mxu0 0
    %182 = vmatpush1.bf16.msra.mxu0 0
    %183 = vmatprep.subr.bf16.mxu0 0
    %184 = vmatpush1.bf16.msra.mxu0 0
    %185 = vmatprep.mubr.bf16.mxu0 0
    %186 = vmatmul.mubr.bf16.gmra.mrb[0].mxu0 %v81
    %v187 = vpop.f32.mrb[0].mxu0
    %v188 = vadd.f32 %v103, %v187
    %v189 = vpop.f32.mrb[0].mxu0
    %v190 = vpop.f32.mrb[0].mxu0
    %v191 = vpop.f32.mrb[0].mxu0
    %192 = vdwg.mxu0
    %v193 = vmul.f32 %v188, 0.5
    %v194 = vmul.f32 %v188, 0.044715
    %v195 = vmul.f32 %v194, %v188
    %v196 = vmul.f32 %v195, %v188
    %v197 = vadd.f32 %v188, %v196
    %v198 = vmul.f32 %v197, 0.7978846
    %v199 = vtanh.pop %v198
    %v200 = vadd.f32 %v199, 1.0
    %v201 = vmul.f32 %v193, %v200
    %v202 = vpack.c.bf16 %v201, %v201
    %v203 = vld [vmem:[#allocation7] sm:$0xf]
    %v204 = vld [vmem:[#allocation7 + $0x4] sm:$0xf]
    %v205 = vld [vmem:[#allocation7 + $0x8] sm:$0xf]
    %v206 = vld [vmem:[#allocation7 + $0xc] sm:$0xf]
    %v207 = vld [vmem:[#allocation7 + $0x10] sm:$0xf]
    %v208 = vld [vmem:[#allocation7 + $0x14] sm:$0xf]
    %v209 = vld [vmem:[#allocation7 + $0x18] sm:$0xf]
    %v210 = vld [vmem:[#allocation7 + $0x1c] sm:$0xf]
    %v211 = vld [vmem:[#allocation7 + $0x20] sm:$0xf]
    %v212 = vld [vmem:[#allocation7 + $0x24] sm:$0xf]
    %v213 = vld [vmem:[#allocation7 + $0x28] sm:$0xf]
    %v214 = vld [vmem:[#allocation7 + $0x2c] sm:$0xf]
    %v215 = vld [vmem:[#allocation7 + $0x30] sm:$0xf]
    %v216 = vld [vmem:[#allocation7 + $0x34] sm:$0xf]
    %v217 = vld [vmem:[#allocation7 + $0x38] sm:$0xf]
    %v218 = vld [vmem:[#allocation7 + $0x3c] sm:$0xf]
    %v219 = vld [vmem:[%s4] sm:$0x1]
    %v221 = vlaneseq
    %v222 = vshrl.u32 %v221, 7
    %v223 = vsub.s32 0, %v222
    %v224 = vrot.slane %v219, %v223
    %v242 = vunpack.c.l.b16 %v203
    %v243 = vunpack.c.l.b16 %v204
    %v244 = vunpack.c.l.b16 %v205
    %v245 = vunpack.c.l.b16 %v206
    %v246 = vunpack.c.l.b16 %v207
    %v247 = vunpack.c.l.b16 %v208
    %v248 = vunpack.c.l.b16 %v209
    %v249 = vunpack.c.l.b16 %v210
    %v250 = vunpack.c.l.b16 %v211
    %v251 = vunpack.c.l.b16 %v212
    %v252 = vunpack.c.l.b16 %v213
    %v253 = vunpack.c.l.b16 %v214
    %v254 = vunpack.c.l.b16 %v215
    %v255 = vunpack.c.l.b16 %v216
    %v256 = vunpack.c.l.b16 %v217
    %v257 = vunpack.c.l.b16 %v218
    %v258 = vpack.c.b16 %v243, %v242
    %v259 = vpack.c.b16 %v245, %v244
    %v260 = vpack.c.b16 %v247, %v246
    %v261 = vpack.c.b16 %v249, %v248
    %v262 = vpack.c.b16 %v251, %v250
    %v263 = vpack.c.b16 %v253, %v252
    %v264 = vpack.c.b16 %v255, %v254
    %v265 = vpack.c.b16 %v257, %v256
    %274 = vmatprep.subr.bf16.mxu0 0
    %275 = vmatpush1.bf16.msra.mxu0 %v258
    %276 = vmatprep.subr.bf16.mxu0 0
    %277 = vmatpush1.bf16.msra.mxu0 %v259
    %278 = vmatprep.subr.bf16.mxu0 0
    %279 = vmatpush1.bf16.msra.mxu0 %v260
    %280 = vmatprep.subr.bf16.mxu0 0
    %281 = vmatpush1.bf16.msra.mxu0 %v261
    %282 = vmatprep.subr.bf16.mxu0 0
    %283 = vmatpush1.bf16.msra.mxu0 %v262
    %284 = vmatprep.subr.bf16.mxu0 0
    %285 = vmatpush1.bf16.msra.mxu0 %v263
    %286 = vmatprep.subr.bf16.mxu0 0
    %287 = vmatpush1.bf16.msra.mxu0 %v264
    %288 = vmatprep.subr.bf16.mxu0 0
    %289 = vmatpush1.bf16.msra.mxu0 %v265
    %290 = vmatprep.subr.bf16.mxu0 0
    %291 = vmatpush1.bf16.msra.mxu0 0
    %292 = vmatprep.subr.bf16.mxu0 0
    %293 = vmatpush1.bf16.msra.mxu0 0
    %294 = vmatprep.subr.bf16.mxu0 0
    %295 = vmatpush1.bf16.msra.mxu0 0
    %296 = vmatprep.subr.bf16.mxu0 0
    %297 = vmatpush1.bf16.msra.mxu0 0
    %298 = vmatprep.subr.bf16.mxu0 0
    %299 = vmatpush1.bf16.msra.mxu0 0
    %300 = vmatprep.subr.bf16.mxu0 0
    %301 = vmatpush1.bf16.msra.mxu0 0
    %302 = vmatprep.subr.bf16.mxu0 0
    %303 = vmatpush1.bf16.msra.mxu0 0
    %304 = vmatprep.subr.bf16.mxu0 0
    %305 = vmatpush1.bf16.msra.mxu0 0
    %306 = vmatprep.mubr.bf16.mxu0 0
    %307 = vmatmul.mubr.bf16.gmra.mrb[0].mxu0 %v202
    %v308 = vpop.f32.mrb[0].mxu0
    %v309 = vadd.f32 %v224, %v308
    %v310 = vpop.f32.mrb[0].mxu0
    %v311 = vpop.f32.mrb[0].mxu0
    %v312 = vpop.f32.mrb[0].mxu0
    %313 = vdwg.mxu0
    %v314 = vmul.f32 %v309, 0.5
    %v315 = vmul.f32 %v309, 0.044715
    %v316 = vmul.f32 %v315, %v309
    %v317 = vmul.f32 %v316, %v309
    %v318 = vadd.f32 %v309, %v317
    %v319 = vmul.f32 %v318, 0.7978846
    %v320 = vtanh.pop %v319
    %v321 = vadd.f32 %v320, 1.0
    %v322 = vmul.f32 %v314, %v321
    %v323 = vpack.c.bf16 %v322, %v322
    %v324 = vld [vmem:[#allocation8] sm:$0xf]
    %v325 = vld [vmem:[#allocation8 + $0x4] sm:$0xf]
    %v326 = vld [vmem:[#allocation8 + $0x8] sm:$0xf]
    %v327 = vld [vmem:[#allocation8 + $0xc] sm:$0xf]
    %v328 = vld [vmem:[#allocation8 + $0x10] sm:$0xf]
    %v329 = vld [vmem:[#allocation8 + $0x14] sm:$0xf]
    %v330 = vld [vmem:[#allocation8 + $0x18] sm:$0xf]
    %v331 = vld [vmem:[#allocation8 + $0x1c] sm:$0xf]
    %v332 = vld [vmem:[#allocation8 + $0x20] sm:$0xf]
    %v333 = vld [vmem:[#allocation8 + $0x24] sm:$0xf]
    %v334 = vld [vmem:[#allocation8 + $0x28] sm:$0xf]
    %v335 = vld [vmem:[#allocation8 + $0x2c] sm:$0xf]
    %v336 = vld [vmem:[#allocation8 + $0x30] sm:$0xf]
    %v337 = vld [vmem:[#allocation8 + $0x34] sm:$0xf]
    %v338 = vld [vmem:[#allocation8 + $0x38] sm:$0xf]
    %v339 = vld [vmem:[#allocation8 + $0x3c] sm:$0xf]
    %v340 = vld [vmem:[%s6] sm:$0x1]
    %v342 = vlaneseq
    %v343 = vshrl.u32 %v342, 7
    %v344 = vsub.s32 0, %v343
    %v345 = vrot.slane %v340, %v344
    %v363 = vunpack.c.l.b16 %v324
    %v364 = vunpack.c.l.b16 %v325
    %v365 = vunpack.c.l.b16 %v326
    %v366 = vunpack.c.l.b16 %v327
    %v367 = vunpack.c.l.b16 %v328
    %v368 = vunpack.c.l.b16 %v329
    %v369 = vunpack.c.l.b16 %v330
    %v370 = vunpack.c.l.b16 %v331
    %v371 = vunpack.c.l.b16 %v332
    %v372 = vunpack.c.l.b16 %v333
    %v373 = vunpack.c.l.b16 %v334
    %v374 = vunpack.c.l.b16 %v335
    %v375 = vunpack.c.l.b16 %v336
    %v376 = vunpack.c.l.b16 %v337
    %v377 = vunpack.c.l.b16 %v338
    %v378 = vunpack.c.l.b16 %v339
    %v379 = vpack.c.b16 %v364, %v363
    %v380 = vpack.c.b16 %v366, %v365
    %v381 = vpack.c.b16 %v368, %v367
    %v382 = vpack.c.b16 %v370, %v369
    %v383 = vpack.c.b16 %v372, %v371
    %v384 = vpack.c.b16 %v374, %v373
    %v385 = vpack.c.b16 %v376, %v375
    %v386 = vpack.c.b16 %v378, %v377
    %395 = vmatprep.subr.bf16.mxu0 0
    %396 = vmatpush1.bf16.msra.mxu0 %v379
    %397 = vmatprep.subr.bf16.mxu0 0
    %398 = vmatpush1.bf16.msra.mxu0 %v380
    %399 = vmatprep.subr.bf16.mxu0 0
    %400 = vmatpush1.bf16.msra.mxu0 %v381
    %401 = vmatprep.subr.bf16.mxu0 0
    %402 = vmatpush1.bf16.msra.mxu0 %v382
    %403 = vmatprep.subr.bf16.mxu0 0
    %404 = vmatpush1.bf16.msra.mxu0 %v383
    %405 = vmatprep.subr.bf16.mxu0 0
    %406 = vmatpush1.bf16.msra.mxu0 %v384
    %407 = vmatprep.subr.bf16.mxu0 0
    %408 = vmatpush1.bf16.msra.mxu0 %v385
    %409 = vmatprep.subr.bf16.mxu0 0
    %410 = vmatpush1.bf16.msra.mxu0 %v386
    %411 = vmatprep.subr.bf16.mxu0 0
    %412 = vmatpush1.bf16.msra.mxu0 0
    %413 = vmatprep.subr.bf16.mxu0 0
    %414 = vmatpush1.bf16.msra.mxu0 0
    %415 = vmatprep.subr.bf16.mxu0 0
    %416 = vmatpush1.bf16.msra.mxu0 0
    %417 = vmatprep.subr.bf16.mxu0 0
    %418 = vmatpush1.bf16.msra.mxu0 0
    %419 = vmatprep.subr.bf16.mxu0 0
    %420 = vmatpush1.bf16.msra.mxu0 0
    %421 = vmatprep.subr.bf16.mxu0 0
    %422 = vmatpush1.bf16.msra.mxu0 0
    %423 = vmatprep.subr.bf16.mxu0 0
    %424 = vmatpush1.bf16.msra.mxu0 0
    %425 = vmatprep.subr.bf16.mxu0 0
    %426 = vmatpush1.bf16.msra.mxu0 0
    %427 = vmatprep.mubr.bf16.mxu0 0
    %428 = vmatmul.mubr.bf16.gmra.mrb[0].mxu0 %v323
    %v429 = vpop.f32.mrb[0].mxu0
    %v430 = vadd.f32 %v345, %v429
    %v431 = vpop.f32.mrb[0].mxu0
    %v432 = vpop.f32.mrb[0].mxu0
    %v433 = vpop.f32.mrb[0].mxu0
    %434 = vdwg.mxu0
    %435 = vst [vmem:[#allocation10] sm:$0xff] %v430
    // Predicated region
    $region46: #{tpu_custom_call.1} parent=1 // pred_check
      _
    $region47: #{tpu_custom_call.1} parent=1 // pred_check_branch
      %437 = sbr.rel (0) target = $region49
    $region48: #{tpu_custom_call.1} parent=1 // pred_region
      %s439 = ssub.s32 128, 128
      %440 = vsyncadd [#allocation4], %s439
      %s442 = sshll.u32 [#allocation10], 4
      %s443 = int_to_ptr.vmem [resolvable:$true] %s442
      %445 = dma.vmem_to_hbm [thread:$0]  %s443, 128, %s7, [#allocation4]
    $region49: #{tpu_custom_call.1} parent=1 // pred_fallthru
      _
    // Predicated region
    $region50: #{tpu_custom_call.1} parent=1 // pred_check
      _
    $region51: #{tpu_custom_call.1} parent=1 // pred_check_branch
      %447 = sbr.rel (0) target = $region53
    $region52: #{tpu_custom_call.1} parent=1 // pred_region
      %448 = dma.done [#allocation4], 128
    $region53: #{tpu_custom_call.1} parent=1 // pred_fallthru
      _
    %449 = vsyncpa [#allocation3], 1
    %450 = vsyncpa [#allocation6], 1
    %451 = vsyncpa [#allocation9], 1
    %452 = vsyncpa [#allocation4], 1

// kernel: tpu_custom_call.1
$region0: #{tpu_custom_call.1}
  #allocation0 [shape = 'u32[]', space=smem, size = 0x4, offset = 0x4, fixed_abs, tag = 'smem constant byte address 0x4 - core index']
  #allocation1 [shape = 'u32[144,128]{1,0:T(1,128)}', space=vmem, size = 0x12000, scoped, tag = 'internal scratch']
  %s0 = inlined_call_operand.hbm [shape: bf16[8,128], index: 0, kind: input, shape index: {}]
  %s1 = inlined_call_operand.hbm [shape: bf16[128,128], index: 1, kind: input, shape index: {}]
  %s2 = inlined_call_operand.vmem [shape: f32[1,128], index: 2, kind: input, shape index: {}]
  %s3 = inlined_call_operand.hbm [shape: bf16[128,128], index: 3, kind: input, shape index: {}]
  %s4 = inlined_call_operand.vmem [shape: f32[1,128], index: 4, kind: input, shape index: {}]
  %s5 = inlined_call_operand.hbm [shape: bf16[128,128], index: 5, kind: input, shape index: {}]
  %s6 = inlined_call_operand.vmem [shape: f32[1,128], index: 6, kind: input, shape index: {}]
  %s7 = inlined_call_operand.hbm [shape: f32[8,128], index: 7, kind: output, shape index: {}]
  %s8 = sld [smem:[#allocation0]]
  $region54: #{tpu_custom_call.1} parent=0
    _
  %s10 = ssub.s32 1, %s8
  %s11 = scalar_select 0, %s10, %s8
  $region1: #{tpu_custom_call.1} parent=0
    #allocation2 [shape = 'u8[2048]{0}', space=vmem, size = 0x800, scoped, tag = 'input window, operand 0, single buffered']
    #allocation3 [shape = 's32[1]{0}', space=sflag, size = 0x4, scoped, tag = 'scoped memory for tpu_custom_call.1']
    #allocation4 [shape = 's32[1]{0}', space=sflag, size = 0x4, scoped, tag = 'scoped memory for tpu_custom_call.1']
    #allocation5 [shape = 'u8[32768]{0}', space=vmem, size = 0x8000, scoped, tag = 'input window, operand 1, single buffered']
    #allocation6 [shape = 's32[1]{0}', space=sflag, size = 0x4, scoped, tag = 'scoped memory for tpu_custom_call.1']
    #allocation7 [shape = 'u8[32768]{0}', space=vmem, size = 0x8000, scoped, tag = 'input window, operand 3, single buffered']
    #allocation8 [shape = 'u8[32768]{0}', space=vmem, size = 0x8000, scoped, tag = 'input window, operand 5, single buffered']
    #allocation9 [shape = 's32[1]{0}', space=sflag, size = 0x4, scoped, tag = 'scoped memory for tpu_custom_call.1']
    #allocation10 [shape = 'u8[4096]{0}', space=vmem, size = 0x1000, scoped, tag = 'output window, operand 0, single buffered']
    %12 = vsyncpa [#allocation3], 0
    %13 = vsyncpa [#allocation6], 0
    %14 = vsyncpa [#allocation9], 0
    %15 = vsyncpa [#allocation4], 0
    // Predicated region
    $region2: #{tpu_custom_call.1} parent=1 // pred_check
      _
    $region3: #{tpu_custom_call.1} parent=1 // pred_check_branch
      %17 = sbr.rel (0) target = $region5
    $region4: #{tpu_custom_call.1} parent=1 // pred_region
      %s19 = ssub.s32 64, 64
      %20 = vsyncadd [#allocation3], %s19
      %s22 = sshll.u32 [#allocation2], 4
      %s23 = int_to_ptr.vmem [resolvable:$true] %s22
      %25 = dma.hbm_to_vmem [thread:$0]  %s0, 64, %s23, [#allocation3]
    $region5: #{tpu_custom_call.1} parent=1 // pred_fallthru
      _
    // Predicated region
    $region6: #{tpu_custom_call.1} parent=1 // pred_check
      _
    $region7: #{tpu_custom_call.1} parent=1 // pred_check_branch
      %27 = sbr.rel (0) target = $region9
    $region8: #{tpu_custom_call.1} parent=1 // pred_region
      %s29 = ssub.s32 1024, 1024
      %30 = vsyncadd [#allocation6], %s29
      %s31 = sshll.u32 [#allocation5], 4
      %s32 = int_to_ptr.vmem [resolvable:$true] %s31
      %37 = dma.hbm_to_vmem [thread:$0]  %s1, 1024, %s32, [#allocation6], 64, 64, 4
    $region9: #{tpu_custom_call.1} parent=1 // pred_fallthru
      _
    // Predicated region
    $region10: #{tpu_custom_call.1} parent=1 // pred_check
      _
    $region11: #{tpu_custom_call.1} parent=1 // pred_check_branch
      %39 = sbr.rel (0) target = $region13
    $region12: #{tpu_custom_call.1} parent=1 // pred_region
      _
    $region13: #{tpu_custom_call.1} parent=1 // pred_fallthru
      _
    // Predicated region
    $region14: #{tpu_custom_call.1} parent=1 // pred_check
      _
    $region15: #{tpu_custom_call.1} parent=1 // pred_check_branch
      %41 = sbr.rel (0) target = $region17
    $region16: #{tpu_custom_call.1} parent=1 // pred_region
      %s43 = ssub.s32 1024, 1024
      %44 = vsyncadd [#allocation6], %s43
      %s45 = sshll.u32 [#allocation7], 4
      %s46 = int_to_ptr.vmem [resolvable:$true] %s45
      %51 = dma.hbm_to_vmem [thread:$0]  %s3, 1024, %s46, [#allocation6], 64, 64, 4
    $region17: #{tpu_custom_call.1} parent=1 // pred_fallthru
      _
    // Predicated region
    $region18: #{tpu_custom_call.1} parent=1 // pred_check
      _
    $region19: #{tpu_custom_call.1} parent=1 // pred_check_branch
      %53 = sbr.rel (0) target = $region21
    $region20: #{tpu_custom_call.1} parent=1 // pred_region
      _
    $region21: #{tpu_custom_call.1} parent=1 // pred_fallthru
      _
    // Predicated region
    $region22: #{tpu_custom_call.1} parent=1 // pred_check
      _
    $region23: #{tpu_custom_call.1} parent=1 // pred_check_branch
      %55 = sbr.rel (0) target = $region25
    $region24: #{tpu_custom_call.1} parent=1 // pred_region
      %s57 = ssub.s32 1024, 1024
      %58 = vsyncadd [#allocation9], %s57
      %s59 = sshll.u32 [#allocation8], 4
      %s60 = int_to_ptr.vmem [resolvable:$true] %s59
      %65 = dma.hbm_to_vmem [thread:$0]  %s5, 1024, %s60, [#allocation9], 64, 64, 4
    $region25: #{tpu_custom_call.1} parent=1 // pred_fallthru
      _
    // Predicated region
    $region26: #{tpu_custom_call.1} parent=1 // pred_check
      _
    $region27: #{tpu_custom_call.1} parent=1 // pred_check_branch
      %67 = sbr.rel (0) target = $region29
    $region28: #{tpu_custom_call.1} parent=1 // pred_region
      _
    $region29: #{tpu_custom_call.1} parent=1 // pred_fallthru
      _
    // Predicated region
    $region30: #{tpu_custom_call.1} parent=1 // pred_check
      _
    $region31: #{tpu_custom_call.1} parent=1 // pred_check_branch
      %69 = sbr.rel (0) target = $region33
    $region32: #{tpu_custom_call.1} parent=1 // pred_region
      %70 = dma.done [#allocation3], 64
    $region33: #{tpu_custom_call.1} parent=1 // pred_fallthru
      _
    // Predicated region
    $region34: #{tpu_custom_call.1} parent=1 // pred_check
      _
    $region35: #{tpu_custom_call.1} parent=1 // pred_check_branch
      %72 = sbr.rel (0) target = $region37
    $region36: #{tpu_custom_call.1} parent=1 // pred_region
      %73 = dma.done [#allocation6], 1024
    $region37: #{tpu_custom_call.1} parent=1 // pred_fallthru
      _
    // Predicated region
    $region38: #{tpu_custom_call.1} parent=1 // pred_check
      _
    $region39: #{tpu_custom_call.1} parent=1 // pred_check_branch
      %75 = sbr.rel (0) target = $region41
    $region40: #{tpu_custom_call.1} parent=1 // pred_region
      %76 = dma.done [#allocation6], 1024
    $region41: #{tpu_custom_call.1} parent=1 // pred_fallthru
      _
    // Predicated region
    $region42: #{tpu_custom_call.1} parent=1 // pred_check
      _
    $region43: #{tpu_custom_call.1} parent=1 // pred_check_branch
      %78 = sbr.rel (0) target = $region45
    $region44: #{tpu_custom_call.1} parent=1 // pred_region
      %79 = dma.done [#allocation9], 1024
    $region45: #{tpu_custom_call.1} parent=1 // pred_fallthru
      _
    %v81 = vld [vmem:[#allocation2] sm:$0xf]
    %v82 = vld [vmem:[#allocation5] sm:$0xf]
    %v83 = vld [vmem:[#allocation5 + $0x4] sm:$0xf]
    %v84 = vld [vmem:[#allocation5 + $0x8] sm:$0xf]
    %v85 = vld [vmem:[#allocation5 + $0xc] sm:$0xf]
    %v86 = vld [vmem:[#allocation5 + $0x10] sm:$0xf]
    %v87 = vld [vmem:[#allocation5 + $0x14] sm:$0xf]
    %v88 = vld [vmem:[#allocation5 + $0x18] sm:$0xf]
    %v89 = vld [vmem:[#allocation5 + $0x1c] sm:$0xf]
    %v90 = vld [vmem:[#allocation5 + $0x20] sm:$0xf]
    %v91 = vld [vmem:[#allocation5 + $0x24] sm:$0xf]
    %v92 = vld [vmem:[#allocation5 + $0x28] sm:$0xf]
    %v93 = vld [vmem:[#allocation5 + $0x2c] sm:$0xf]
    %v94 = vld [vmem:[#allocation5 + $0x30] sm:$0xf]
    %v95 = vld [vmem:[#allocation5 + $0x34] sm:$0xf]
    %v96 = vld [vmem:[#allocation5 + $0x38] sm:$0xf]
    %v97 = vld [vmem:[#allocation5 + $0x3c] sm:$0xf]
    %v98 = vld [vmem:[%s2] sm:$0x1]
    %v100 = vlaneseq
    %v101 = vshrl.u32 %v100, 7
    %v102 = vsub.s32 0, %v101
    %v103 = vrot.slane %v98, %v102
    %v121 = vunpack.c.l.b16 %v82
    %v122 = vunpack.c.l.b16 %v83
    %v123 = vunpack.c.l.b16 %v84
    %v124 = vunpack.c.l.b16 %v85
    %v125 = vunpack.c.l.b16 %v86
    %v126 = vunpack.c.l.b16 %v87
    %v127 = vunpack.c.l.b16 %v88
    %v128 = vunpack.c.l.b16 %v89
    %v129 = vunpack.c.l.b16 %v90
    %v130 = vunpack.c.l.b16 %v91
    %v131 = vunpack.c.l.b16 %v92
    %v132 = vunpack.c.l.b16 %v93
    %v133 = vunpack.c.l.b16 %v94
    %v134 = vunpack.c.l.b16 %v95
    %v135 = vunpack.c.l.b16 %v96
    %v136 = vunpack.c.l.b16 %v97
    %v137 = vpack.c.b16 %v122, %v121
    %v138 = vpack.c.b16 %v124, %v123
    %v139 = vpack.c.b16 %v126, %v125
    %v140 = vpack.c.b16 %v128, %v127
    %v141 = vpack.c.b16 %v130, %v129
    %v142 = vpack.c.b16 %v132, %v131
    %v143 = vpack.c.b16 %v134, %v133
    %v144 = vpack.c.b16 %v136, %v135
    %153 = vmatprep.subr.bf16.mxu0 0
    %154 = vmatpush1.bf16.msra.mxu0 %v137
    %155 = vmatprep.subr.bf16.mxu0 0
    %156 = vmatpush1.bf16.msra.mxu0 %v138
    %157 = vmatprep.subr.bf16.mxu0 0
    %158 = vmatpush1.bf16.msra.mxu0 %v139
    %159 = vmatprep.subr.bf16.mxu0 0
    %160 = vmatpush1.bf16.msra.mxu0 %v140
    %161 = vmatprep.subr.bf16.mxu0 0
    %162 = vmatpush1.bf16.msra.mxu0 %v141
    %163 = vmatprep.subr.bf16.mxu0 0
    %164 = vmatpush1.bf16.msra.mxu0 %v142
    %165 = vmatprep.subr.bf16.mxu0 0
    %166 = vmatpush1.bf16.msra.mxu0 %v143
    %167 = vmatprep.subr.bf16.mxu0 0
    %168 = vmatpush1.bf16.msra.mxu0 %v144
    %169 = vmatprep.subr.bf16.mxu0 0
    %170 = vmatpush1.bf16.msra.mxu0 0
    %171 = vmatprep.subr.bf16.mxu0 0
    %172 = vmatpush1.bf16.msra.mxu0 0
    %173 = vmatprep.subr.bf16.mxu0 0
    %174 = vmatpush1.bf16.msra.mxu0 0
    %175 = vmatprep.subr.bf16.mxu0 0
    %176 = vmatpush1.bf16.msra.mxu0 0
    %177 = vmatprep.subr.bf16.mxu0 0
    %178 = vmatpush1.bf16.msra.mxu0 0
    %179 = vmatprep.subr.bf16.mxu0 0
    %180 = vmatpush1.bf16.msra.mxu0 0
    %181 = vmatprep.subr.bf16.mxu0 0
    %182 = vmatpush1.bf16.msra.mxu0 0
    %183 = vmatprep.subr.bf16.mxu0 0
    %184 = vmatpush1.bf16.msra.mxu0 0
    %185 = vmatprep.mubr.bf16.mxu0 0
    %186 = vmatmul.mubr.bf16.gmra.mrb[0].mxu0 %v81
    %v187 = vpop.f32.mrb[0].mxu0
    %v188 = vadd.f32 %v103, %v187
    %v189 = vpop.f32.mrb[0].mxu0
    %v190 = vpop.f32.mrb[0].mxu0
    %v191 = vpop.f32.mrb[0].mxu0
    %192 = vdwg.mxu0
    %v193 = vmul.f32 %v188, 0.5
    %v194 = vmul.f32 %v188, 0.044715
    %v195 = vmul.f32 %v194, %v188
    %v196 = vmul.f32 %v195, %v188
    %v197 = vadd.f32 %v188, %v196
    %v198 = vmul.f32 %v197, 0.7978846
    %v199 = vtanh.pop %v198
    %v200 = vadd.f32 %v199, 1.0
    %v201 = vmul.f32 %v193, %v200
    %v202 = vpack.c.bf16 %v201, %v201
    %v203 = vld [vmem:[#allocation7] sm:$0xf]
    %v204 = vld [vmem:[#allocation7 + $0x4] sm:$0xf]
    %v205 = vld [vmem:[#allocation7 + $0x8] sm:$0xf]
    %v206 = vld [vmem:[#allocation7 + $0xc] sm:$0xf]
    %v207 = vld [vmem:[#allocation7 + $0x10] sm:$0xf]
    %v208 = vld [vmem:[#allocation7 + $0x14] sm:$0xf]
    %v209 = vld [vmem:[#allocation7 + $0x18] sm:$0xf]
    %v210 = vld [vmem:[#allocation7 + $0x1c] sm:$0xf]
    %v211 = vld [vmem:[#allocation7 + $0x20] sm:$0xf]
    %v212 = vld [vmem:[#allocation7 + $0x24] sm:$0xf]
    %v213 = vld [vmem:[#allocation7 + $0x28] sm:$0xf]
    %v214 = vld [vmem:[#allocation7 + $0x2c] sm:$0xf]
    %v215 = vld [vmem:[#allocation7 + $0x30] sm:$0xf]
    %v216 = vld [vmem:[#allocation7 + $0x34] sm:$0xf]
    %v217 = vld [vmem:[#allocation7 + $0x38] sm:$0xf]
    %v218 = vld [vmem:[#allocation7 + $0x3c] sm:$0xf]
    %v219 = vld [vmem:[%s4] sm:$0x1]
    %v221 = vlaneseq
    %v222 = vshrl.u32 %v221, 7
    %v223 = vsub.s32 0, %v222
    %v224 = vrot.slane %v219, %v223
    %v242 = vunpack.c.l.b16 %v203
    %v243 = vunpack.c.l.b16 %v204
    %v244 = vunpack.c.l.b16 %v205
    %v245 = vunpack.c.l.b16 %v206
    %v246 = vunpack.c.l.b16 %v207
    %v247 = vunpack.c.l.b16 %v208
    %v248 = vunpack.c.l.b16 %v209
    %v249 = vunpack.c.l.b16 %v210
    %v250 = vunpack.c.l.b16 %v211
    %v251 = vunpack.c.l.b16 %v212
    %v252 = vunpack.c.l.b16 %v213
    %v253 = vunpack.c.l.b16 %v214
    %v254 = vunpack.c.l.b16 %v215
    %v255 = vunpack.c.l.b16 %v216
    %v256 = vunpack.c.l.b16 %v217
    %v257 = vunpack.c.l.b16 %v218
    %v258 = vpack.c.b16 %v243, %v242
    %v259 = vpack.c.b16 %v245, %v244
    %v260 = vpack.c.b16 %v247, %v246
    %v261 = vpack.c.b16 %v249, %v248
    %v262 = vpack.c.b16 %v251, %v250
    %v263 = vpack.c.b16 %v253, %v252
    %v264 = vpack.c.b16 %v255, %v254
    %v265 = vpack.c.b16 %v257, %v256
    %274 = vmatprep.subr.bf16.mxu0 0
    %275 = vmatpush1.bf16.msra.mxu0 %v258
    %276 = vmatprep.subr.bf16.mxu0 0
    %277 = vmatpush1.bf16.msra.mxu0 %v259
    %278 = vmatprep.subr.bf16.mxu0 0
    %279 = vmatpush1.bf16.msra.mxu0 %v260
    %280 = vmatprep.subr.bf16.mxu0 0
    %281 = vmatpush1.bf16.msra.mxu0 %v261
    %282 = vmatprep.subr.bf16.mxu0 0
    %283 = vmatpush1.bf16.msra.mxu0 %v262
    %284 = vmatprep.subr.bf16.mxu0 0
    %285 = vmatpush1.bf16.msra.mxu0 %v263
    %286 = vmatprep.subr.bf16.mxu0 0
    %287 = vmatpush1.bf16.msra.mxu0 %v264
    %288 = vmatprep.subr.bf16.mxu0 0
    %289 = vmatpush1.bf16.msra.mxu0 %v265
    %290 = vmatprep.subr.bf16.mxu0 0
    %291 = vmatpush1.bf16.msra.mxu0 0
    %292 = vmatprep.subr.bf16.mxu0 0
    %293 = vmatpush1.bf16.msra.mxu0 0
    %294 = vmatprep.subr.bf16.mxu0 0
    %295 = vmatpush1.bf16.msra.mxu0 0
    %296 = vmatprep.subr.bf16.mxu0 0
    %297 = vmatpush1.bf16.msra.mxu0 0
    %298 = vmatprep.subr.bf16.mxu0 0
    %299 = vmatpush1.bf16.msra.mxu0 0
    %300 = vmatprep.subr.bf16.mxu0 0
    %301 = vmatpush1.bf16.msra.mxu0 0
    %302 = vmatprep.subr.bf16.mxu0 0
    %303 = vmatpush1.bf16.msra.mxu0 0
    %304 = vmatprep.subr.bf16.mxu0 0
    %305 = vmatpush1.bf16.msra.mxu0 0
    %306 = vmatprep.mubr.bf16.mxu0 0
    %307 = vmatmul.mubr.bf16.gmra.mrb[0].mxu0 %v202
    %v308 = vpop.f32.mrb[0].mxu0
    %v309 = vadd.f32 %v224, %v308
    %v310 = vpop.f32.mrb[0].mxu0
    %v311 = vpop.f32.mrb[0].mxu0
    %v312 = vpop.f32.mrb[0].mxu0
    %313 = vdwg.mxu0
    %v314 = vmul.f32 %v309, 0.5
    %v315 = vmul.f32 %v309, 0.044715
    %v316 = vmul.f32 %v315, %v309
    %v317 = vmul.f32 %v316, %v309
    %v318 = vadd.f32 %v309, %v317
    %v319 = vmul.f32 %v318, 0.7978846
    %v320 = vtanh.pop %v319
    %v321 = vadd.f32 %v320, 1.0
    %v322 = vmul.f32 %v314, %v321
    %v323 = vpack.c.bf16 %v322, %v322
    %v324 = vld [vmem:[#allocation8] sm:$0xf]
    %v325 = vld [vmem:[#allocation8 + $0x4] sm:$0xf]
    %v326 = vld [vmem:[#allocation8 + $0x8] sm:$0xf]
    %v327 = vld [vmem:[#allocation8 + $0xc] sm:$0xf]
    %v328 = vld [vmem:[#allocation8 + $0x10] sm:$0xf]
    %v329 = vld [vmem:[#allocation8 + $0x14] sm:$0xf]
    %v330 = vld [vmem:[#allocation8 + $0x18] sm:$0xf]
    %v331 = vld [vmem:[#allocation8 + $0x1c] sm:$0xf]
    %v332 = vld [vmem:[#allocation8 + $0x20] sm:$0xf]
    %v333 = vld [vmem:[#allocation8 + $0x24] sm:$0xf]
    %v334 = vld [vmem:[#allocation8 + $0x28] sm:$0xf]
    %v335 = vld [vmem:[#allocation8 + $0x2c] sm:$0xf]
    %v336 = vld [vmem:[#allocation8 + $0x30] sm:$0xf]
    %v337 = vld [vmem:[#allocation8 + $0x34] sm:$0xf]
    %v338 = vld [vmem:[#allocation8 + $0x38] sm:$0xf]
    %v339 = vld [vmem:[#allocation8 + $0x3c] sm:$0xf]
    %v340 = vld [vmem:[%s6] sm:$0x1]
    %v342 = vlaneseq
    %v343 = vshrl.u32 %v342, 7
    %v344 = vsub.s32 0, %v343
    %v345 = vrot.slane %v340, %v344
    %v363 = vunpack.c.l.b16 %v324
    %v364 = vunpack.c.l.b16 %v325
    %v365 = vunpack.c.l.b16 %v326
    %v366 = vunpack.c.l.b16 %v327
    %v367 = vunpack.c.l.b16 %v328
    %v368 = vunpack.c.l.b16 %v329
    %v369 = vunpack.c.l.b16 %v330
    %v370 = vunpack.c.l.b16 %v331
    %v371 = vunpack.c.l.b16 %v332
    %v372 = vunpack.c.l.b16 %v333
    %v373 = vunpack.c.l.b16 %v334
    %v374 = vunpack.c.l.b16 %v335
    %v375 = vunpack.c.l.b16 %v336
    %v376 = vunpack.c.l.b16 %v337
    %v377 = vunpack.c.l.b16 %v338
    %v378 = vunpack.c.l.b16 %v339
    %v379 = vpack.c.b16 %v364, %v363
    %v380 = vpack.c.b16 %v366, %v365
    %v381 = vpack.c.b16 %v368, %v367
    %v382 = vpack.c.b16 %v370, %v369
    %v383 = vpack.c.b16 %v372, %v371
    %v384 = vpack.c.b16 %v374, %v373
    %v385 = vpack.c.b16 %v376, %v375
    %v386 = vpack.c.b16 %v378, %v377
    %395 = vmatprep.subr.bf16.mxu0 0
    %396 = vmatpush1.bf16.msra.mxu0 %v379
    %397 = vmatprep.subr.bf16.mxu0 0
    %398 = vmatpush1.bf16.msra.mxu0 %v380
    %399 = vmatprep.subr.bf16.mxu0 0
    %400 = vmatpush1.bf16.msra.mxu0 %v381
    %401 = vmatprep.subr.bf16.mxu0 0
    %402 = vmatpush1.bf16.msra.mxu0 %v382
    %403 = vmatprep.subr.bf16.mxu0 0
    %404 = vmatpush1.bf16.msra.mxu0 %v383
    %405 = vmatprep.subr.bf16.mxu0 0
    %406 = vmatpush1.bf16.msra.mxu0 %v384
    %407 = vmatprep.subr.bf16.mxu0 0
    %408 = vmatpush1.bf16.msra.mxu0 %v385
    %409 = vmatprep.subr.bf16.mxu0 0
    %410 = vmatpush1.bf16.msra.mxu0 %v386
    %411 = vmatprep.subr.bf16.mxu0 0
    %412 = vmatpush1.bf16.msra.mxu0 0
    %413 = vmatprep.subr.bf16.mxu0 0
    %414 = vmatpush1.bf16.msra.mxu0 0
    %415 = vmatprep.subr.bf16.mxu0 0
    %416 = vmatpush1.bf16.msra.mxu0 0
    %417 = vmatprep.subr.bf16.mxu0 0
    %418 = vmatpush1.bf16.msra.mxu0 0
    %419 = vmatprep.subr.bf16.mxu0 0
    %420 = vmatpush1.bf16.msra.mxu0 0
    %421 = vmatprep.subr.bf16.mxu0 0
    %422 = vmatpush1.bf16.msra.mxu0 0
    %423 = vmatprep.subr.bf16.mxu0 0
    %424 = vmatpush1.bf16.msra.mxu0 0
    %425 = vmatprep.subr.bf16.mxu0 0
    %426 = vmatpush1.bf16.msra.mxu0 0
    %427 = vmatprep.mubr.bf16.mxu0 0
    %428 = vmatmul.mubr.bf16.gmra.mrb[0].mxu0 %v323
    %v429 = vpop.f32.mrb[0].mxu0
    %v430 = vadd.f32 %v345, %v429
    %v431 = vpop.f32.mrb[0].mxu0
    %v432 = vpop.f32.mrb[0].mxu0
    %v433 = vpop.f32.mrb[0].mxu0
    %434 = vdwg.mxu0
    %435 = vst [vmem:[#allocation10] sm:$0xff] %v430
    // Predicated region
    $region46: #{tpu_custom_call.1} parent=1 // pred_check
      _
    $region47: #{tpu_custom_call.1} parent=1 // pred_check_branch
      %437 = sbr.rel (0) target = $region49
    $region48: #{tpu_custom_call.1} parent=1 // pred_region
      %s439 = ssub.s32 128, 128
      %440 = vsyncadd [#allocation4], %s439
      %s442 = sshll.u32 [#allocation10], 4
      %s443 = int_to_ptr.vmem [resolvable:$true] %s442
      %445 = dma.vmem_to_hbm [thread:$0]  %s443, 128, %s7, [#allocation4]
    $region49: #{tpu_custom_call.1} parent=1 // pred_fallthru
      _
    // Predicated region
    $region50: #{tpu_custom_call.1} parent=1 // pred_check
      _
    $region51: #{tpu_custom_call.1} parent=1 // pred_check_branch
      %447 = sbr.rel (0) target = $region53
    $region52: #{tpu_custom_call.1} parent=1 // pred_region
      %448 = dma.done [#allocation4], 128
    $region53: #{tpu_custom_call.1} parent=1 // pred_fallthru
      _
    %449 = vsyncpa [#allocation3], 1
    %450 = vsyncpa [#allocation6], 1
    %451 = vsyncpa [#allocation9], 1
    %452 = vsyncpa [#allocation4], 1

</llo_original>
